<compile_context>
chip_gen: v6e
topology: v6e:2x2x1
jax: 0.10.0
libtpu: 0.0.40
codegen_flags: <defaults>
</compile_context>

<pallas_src>
import functools

import jax
import jax.numpy as jnp
from jax.experimental import pallas as pl
from jax.experimental.pallas import tpu as pltpu

LLAMA_NAMES = ['unsloth/Llama-3.2-1B', 'Qwen/Qwen2.5-1.5B',
               'deepseek-ai/DeepSeek-R1-Distill-Qwen-1.5B']


# ---------------------------------------------------------------------------
# tiling helpers
# ---------------------------------------------------------------------------
def _pick_tile(n, requested=None, *, mult=8, cap=512):
    """Largest tile <= cap that divides n and is a multiple of `mult` (else n itself)."""
    if (requested is not None and n % requested == 0
            and (requested % mult == 0 or requested == n)):
        return requested
    best = None
    for t in range(mult, min(n, cap) + 1, mult):
        if n % t == 0:
            best = t
    return best if best is not None else n


def _row_tile_cap(lane_width, mult):
    """Cap the row tile so the f32 accumulator (rows x lane_width x 4B) stays <= ~256 KiB."""
    cap = (256 * 1024) // (4 * max(int(lane_width), 1))
    cap = (cap // mult) * mult
    return min(512, max(mult, cap))


def _pick_lane_tile(n, requested=None, cap=512):
    """Lane (output-feature) tile: full width, or a 128-multiple that divides n."""
    if (requested is not None and requested < n and n % requested == 0
            and requested % 128 == 0):
        return requested
    if n % 128 == 0 and n > cap:
        t = (cap // 128) * 128
        while t >= 128:
            if n % t == 0:
                return t
            t -= 128
    return n


def _is_bf16(dtype):
    return jnp.dtype(dtype) == jnp.dtype(jnp.bfloat16)


# ---------------------------------------------------------------------------
# Kernel 1: fused multi-conv + concat + linear + GELU + norm (single contraction)
# ---------------------------------------------------------------------------
def _token_linear_kernel(xcol_ref, m_ref, b_ref, g_ref, beta_ref, o_ref, *,
                         use_rms_norm, eps):
    # xcol_ref: (1, TL, Jc)   im2col'd input tile (matmul dtype)
    # m_ref:    (Jc, d_model) folded conv+linear weights (resident)
    # b_ref / g_ref / beta_ref: (1, d_model) f32 bias / norm scale / norm shift (resident)
    # o_ref:    (1, TL, d_model)
    h = jnp.dot(xcol_ref[0], m_ref[...], preferred_element_type=jnp.float32)
    h = h + b_ref[...]
    h = jax.nn.gelu(h, approximate=True)   # TODO(synk): PyTorch nn.GELU() default is exact erf
    if use_rms_norm:
        ms = jnp.mean(h * h, axis=-1, keepdims=True)
        h = h * jax.lax.rsqrt(ms + eps) * g_ref[...]
    else:
        mu = jnp.mean(h, axis=-1, keepdims=True)
        xc = h - mu
        var = jnp.mean(xc * xc, axis=-1, keepdims=True)
        h = xc * jax.lax.rsqrt(var + eps) * g_ref[...] + beta_ref[...]
    o_ref[0] = h.astype(o_ref.dtype)


def _token_front_end(x, conv_ws, lin_w, lin_b, norm_w, norm_b, *,
                     token_kernels, use_rms_norm, eps, seq_tile=None,
                     matmul_dtype=None):
    B, L, c_in = x.shape
    d_model = lin_w.shape[0]
    mm_dtype = matmul_dtype if matmul_dtype is not None else x.dtype

    assert all(k % 2 == 1 for k in token_kernels), "token_kernels must be odd"
    pads = [(k - 1) // 2 for k in token_kernels]
    p_max = max(pads)
    n_off = 2 * p_max + 1          # unique tap offsets shared by all conv kernels
    jc = n_off * c_in

    # --- fold conv weights (c_out_k, c_in, k) + linear (d_model, sum c_out_k) into one
    #     (n_off*c_in, d_model) matrix, de-duplicated over shared tap offsets.  Exactly
    #     equal to Linear(cat(conv_k(x))). ---
    lin_w32 = lin_w.astype(jnp.float32)
    m_fold = jnp.zeros((n_off, c_in, d_model), jnp.float32)
    col = 0
    for k, p, w in zip(token_kernels, pads, conv_ws):
        dim_k = w.shape[0]
        lin_chunk = lin_w32[:, col:col + dim_k]                   # (d_model, dim_k)
        w32 = w.astype(jnp.float32)
        for t in range(k):
            off = t - p + p_max                                   # 0 .. 2*p_max
            m_fold = m_fold.at[off].add(w32[:, :, t].T @ lin_chunk.T)
        col += dim_k
    m_fold = m_fold.reshape(jc, d_model).astype(mm_dtype)

    # --- wrapper-side im2col: xcol[:, l, off*c_in:(off+1)*c_in] = x[l + off - p_max] ---
    x_pad = jnp.pad(x.astype(mm_dtype), ((0, 0), (p_max, p_max), (0, 0)))
    xcol = jnp.concatenate([x_pad[:, d:d + L, :] for d in range(n_off)], axis=-1)

    bias2d = lin_b.reshape(1, d_model).astype(jnp.float32)
    gamma2d = norm_w.reshape(1, d_model).astype(jnp.float32)
    beta_arr = norm_b if norm_b is not None else jnp.zeros((d_model,), jnp.float32)
    beta2d = beta_arr.reshape(1, d_model).astype(jnp.float32)

    mult = 16 if _is_bf16(mm_dtype) else 8
    tl = _pick_tile(L, seq_tile, mult=mult, cap=_row_tile_cap(d_model, mult))
    n_lt = L // tl

    kernel = functools.partial(_token_linear_kernel,
                               use_rms_norm=use_rms_norm, eps=eps)

    return pl.pallas_call(
        kernel,
        out_shape=jax.ShapeDtypeStruct((B, L, d_model), mm_dtype),
        grid_spec=pltpu.PrefetchScalarGridSpec(
            num_scalar_prefetch=0,
            grid=(B, n_lt),
            in_specs=[
                pl.BlockSpec((1, tl, jc), lambda b, lt: (b, lt, 0)),
                pl.BlockSpec((jc, d_model), lambda b, lt: (0, 0)),
                pl.BlockSpec((1, d_model), lambda b, lt: (0, 0)),
                pl.BlockSpec((1, d_model), lambda b, lt: (0, 0)),
                pl.BlockSpec((1, d_model), lambda b, lt: (0, 0)),
            ],
            out_specs=pl.BlockSpec((1, tl, d_model), lambda b, lt: (b, lt, 0)),
        ),
        compiler_params=pltpu.CompilerParams(
            dimension_semantics=("parallel", "parallel")),
    )(xcol, m_fold, bias2d, gamma2d, beta2d)


# ---------------------------------------------------------------------------
# Kernel 2: strided conv (token_embed): kernel = 2s+1, stride = s, padding = s
# ---------------------------------------------------------------------------
def _strided_conv_kernel(h_ref, w01_ref, wlast_ref, o_ref, *, out_tile, d_model):
    # h_ref:     (1, L_out+2, s*d_model)  padded hidden state packed s rows per super-row
    # w01_ref:   (2, s*d_model, TN)       taps 0..s-1 and s..2s-1 (resident / N-tiled)
    # wlast_ref: (d_model, TN)            tap 2s (no zero padding)
    # o_ref:     (1, out_tile, TN)
    o0 = pl.multiple_of(pl.program_id(1) * out_tile, out_tile)
    rows0 = h_ref[0, pl.ds(o0, out_tile), :]
    acc = jnp.dot(rows0, w01_ref[0], preferred_element_type=jnp.float32)
    rows1 = h_ref[0, pl.ds(o0 + 1, out_tile), :]
    acc = acc + jnp.dot(rows1, w01_ref[1], preferred_element_type=jnp.float32)
    rows2 = h_ref[0, pl.ds(o0 + 2, out_tile), :]
    acc = acc + jnp.dot(rows2[:, :d_model], wlast_ref[...],
                        preferred_element_type=jnp.float32)
    o_ref[0] = acc.astype(o_ref.dtype)


def _strided_token_embed(h, conv2_w, *, stride, out_tile=None, llm_tile=None,
                         out_dtype=None):
    B, L, d_model = h.shape
    d_llm, _, k2 = conv2_w.shape
    s = stride
    assert k2 == 2 * s + 1
    mm_dtype = h.dtype
    out_dtype = out_dtype if out_dtype is not None else mm_dtype

    l_out = (L - 1) // s + 1
    lr = s * (l_out + 2)
    # zero-pad by s in front (= conv padding) and to a multiple of s at the back,
    # then pack s consecutive rows per super-row (pure row-major reshape).
    h_ext = jnp.pad(h, ((0, 0), (s, lr - s - L), (0, 0)))
    h_rows = h_ext.reshape(B, l_out + 2, s * d_model)

    w_t = [conv2_w[:, :, t].T.astype(mm_dtype) for t in range(k2)]   # each (d_model, d_llm)
    w01 = jnp.stack([jnp.concatenate(w_t[:s], axis=0),               # taps 0..s-1
                     jnp.concatenate(w_t[s:2 * s], axis=0)])         # taps s..2s-1
    w_last = w_t[2 * s]                                              # tap 2s, no zero pad

    mult = 16 if _is_bf16(mm_dtype) else 8
    tn = _pick_lane_tile(d_llm, llm_tile)
    to = _pick_tile(l_out, out_tile, mult=mult, cap=_row_tile_cap(tn, mult))
    n_ot = l_out // to
    n_nt = d_llm // tn

    kernel = functools.partial(_strided_conv_kernel, out_tile=to, d_model=d_model)

    return pl.pallas_call(
        kernel,
        out_shape=jax.ShapeDtypeStruct((B, l_out, d_llm), out_dtype),
        grid_spec=pltpu.PrefetchScalarGridSpec(
            num_scalar_prefetch=0,
            grid=(B, n_ot, n_nt),
            in_specs=[
                pl.BlockSpec((1, l_out + 2, s * d_model), lambda b, ot, nt: (b, 0, 0)),
                pl.BlockSpec((2, s * d_model, tn), lambda b, ot, nt: (0, 0, nt)),
                pl.BlockSpec((d_model, tn), lambda b, ot, nt: (0, nt)),
            ],
            out_specs=pl.BlockSpec((1, to, tn), lambda b, ot, nt: (b, ot, nt)),
        ),
        compiler_params=pltpu.CompilerParams(
            dimension_semantics=("parallel", "parallel", "parallel")),
    )(h_rows, w01, w_last)


# ---------------------------------------------------------------------------
# Full TimeEmbedding forward
# ---------------------------------------------------------------------------
def time_embedding_forward(x, params, *, token_kernels, time_stride, llm_name,
                           seq_tile=None, out_tile=None, llm_tile=None,
                           matmul_dtype=None):
    use_rms = llm_name in LLAMA_NAMES
    eps = 1e-6 if use_rms else 1e-5   # TODO(synk): RMSNorm eps assumed (class not in the spec)
    h = _token_front_end(x, params['conv_ws'], params['lin_w'], params['lin_b'],
                         params['norm_w'], params.get('norm_b'),
                         token_kernels=token_kernels, use_rms_norm=use_rms,
                         eps=eps, seq_tile=seq_tile, matmul_dtype=matmul_dtype)
    return _strided_token_embed(h, params['conv2_w'], stride=time_stride,
                                out_tile=out_tile, llm_tile=llm_tile,
                                out_dtype=x.dtype)


# ---------------------------------------------------------------------------
# Pure-JAX reference (mirrors the PyTorch module, un-fused)
# ---------------------------------------------------------------------------
def _conv1d_ref(x, w, stride, padding):
    # x: (B, L, c_in); w: (c_out, c_in, K) PyTorch layout; bias=False
    B, L, _ = x.shape
    c_out, _, K = w.shape
    x_p = jnp.pad(x, ((0, 0), (padding, padding), (0, 0)))
    l_out = (L + 2 * padding - K) // stride + 1
    y = jnp.zeros((B, l_out, c_out), x.dtype)
    for t in range(K):
        xs = x_p[:, t: t + stride * (l_out - 1) + 1: stride, :]
        y = y + jnp.einsum('blc,oc->blo', xs, w[:, :, t],
                           precision=jax.lax.Precision.HIGHEST)
    return y


def time_embedding_ref(x, params, *, token_kernels, time_stride, llm_name):
    use_rms = llm_name in LLAMA_NAMES
    eps = 1e-6 if use_rms else 1e-5
    outs = [_conv1d_ref(x, w, 1, (k - 1) // 2)
            for k, w in zip(token_kernels, params['conv_ws'])]
    cat = jnp.concatenate(outs, axis=-1)
    h = jnp.einsum('blj,dj->bld', cat, params['lin_w'],
                   precision=jax.lax.Precision.HIGHEST) + params['lin_b']
    h = jax.nn.gelu(h, approximate=True)        # dropout: inference identity
    if use_rms:
        h = h * jax.lax.rsqrt(jnp.mean(h * h, -1, keepdims=True) + eps) * params['norm_w']
    else:
        mu = jnp.mean(h, -1, keepdims=True)
        var = jnp.mean((h - mu) ** 2, -1, keepdims=True)
        h = (h - mu) * jax.lax.rsqrt(var + eps) * params['norm_w'] + params['norm_b']
    s = time_stride
    return _conv1d_ref(h, params['conv2_w'], s, s)


# ---------------------------------------------------------------------------
if __name__ == "__main__":
    # Small config consistent with the module's forward.
    B, L = 2, 16
    input_dim = 4
    token_kernels = (3, 5)
    d_model = 32
    d_llm = 64
    time_stride = 4
    llm_name = "gpt2"            # not in llama_names -> LayerNorm branch

    key = jax.random.PRNGKey(0)
    keys = jax.random.split(key, 8)
    x = jax.random.normal(keys[0], (B, L, input_dim), jnp.float32)

    kernel_dims = [input_dim * k // 2 for k in token_kernels]
    d_cat = sum(kernel_dims)
    conv_ws = [0.3 * jax.random.normal(keys[1 + i], (dim, input_dim, k), jnp.float32)
               for i, (dim, k) in enumerate(zip(kernel_dims, token_kernels))]
    lin_w = 0.2 * jax.random.normal(keys[3], (d_model, d_cat), jnp.float32)
    lin_b = 0.1 * jax.random.normal(keys[4], (d_model,), jnp.float32)
    norm_w = 1.0 + 0.1 * jax.random.normal(keys[5], (d_model,), jnp.float32)
    norm_b = 0.1 * jax.random.normal(keys[6], (d_model,), jnp.float32)
    conv2_w = 0.1 * jax.random.normal(keys[7], (d_llm, d_model, 2 * time_stride + 1),
                                      jnp.float32)

    params = dict(conv_ws=conv_ws, lin_w=lin_w, lin_b=lin_b,
                  norm_w=norm_w, norm_b=norm_b, conv2_w=conv2_w)

    ref = time_embedding_ref(x, params, token_kernels=token_kernels,
                             time_stride=time_stride, llm_name=llm_name)
    l_out = (L - 1) // time_stride + 1

    # --- f32 path (exact numerics; seq_tile=8 -> 2 L-tiles exercises tiling) ---
    fwd = jax.jit(functools.partial(time_embedding_forward,
                                    token_kernels=token_kernels,
                                    time_stride=time_stride,
                                    llm_name=llm_name, seq_tile=8))
    out = jax.block_until_ready(fwd(x, params))
    assert out.shape == (B, l_out, d_llm), out.shape
    assert jnp.allclose(out, ref, atol=2e-3, rtol=2e-3), \
        float(jnp.max(jnp.abs(out - ref)))

    # --- bf16 MXU path (v6e/v7x-native matmul dtype), looser tolerance ---
    fwd_bf16 = jax.jit(functools.partial(time_embedding_forward,
                                         token_kernels=token_kernels,
                                         time_stride=time_stride,
                                         llm_name=llm_name,
                                         matmul_dtype=jnp.bfloat16))
    out_bf = jax.block_until_ready(fwd_bf16(x, params))
    assert out_bf.shape == (B, l_out, d_llm), out_bf.shape
    assert jnp.allclose(out_bf, ref, atol=2e-1, rtol=1e-1), \
        float(jnp.max(jnp.abs(out_bf - ref)))

    print("KERNEL_OK")
</pallas_src>

<mosaic_0001>
module attributes {stable_mosaic.version = 11 : i64} {
  func.func @_token_linear_kernel(%arg0: i32, %arg1: i32, %arg2: memref<1x8x20xf32, #tpu.memory_space<vmem>>, %arg3: memref<20x32xf32, #tpu.memory_space<vmem>>, %arg4: memref<1x32xf32, #tpu.memory_space<vmem>>, %arg5: memref<1x32xf32, #tpu.memory_space<vmem>>, %arg6: memref<1x32xf32, #tpu.memory_space<vmem>>, %arg7: memref<1x8x32xf32, #tpu.memory_space<vmem>>) attributes {dimension_semantics = [#tpu.dimension_semantics<parallel>, #tpu.dimension_semantics<parallel>], iteration_bounds = array<i64: 2, 2>, scalar_prefetch = 0 : i64, scratch_operands = 0 : i64, tpu.core_type = #tpu.core_type<tc>, window_params = [{transform_indices = @transform_0, window_bounds = array<i64: 1, 8, 20>}, {pipeline_mode = #tpu.pipeline_mode<synchronous>, transform_indices = @transform_1, window_bounds = array<i64: 20, 32>}, {pipeline_mode = #tpu.pipeline_mode<synchronous>, transform_indices = @transform_2, window_bounds = array<i64: 1, 32>}, {pipeline_mode = #tpu.pipeline_mode<synchronous>, transform_indices = @transform_3, window_bounds = array<i64: 1, 32>}, {pipeline_mode = #tpu.pipeline_mode<synchronous>, transform_indices = @transform_4, window_bounds = array<i64: 1, 32>}, {transform_indices = @transform_5, window_bounds = array<i64: 1, 8, 32>}]} {
    %c0 = arith.constant 0 : index
    %c0_0 = arith.constant 0 : index
    %c0_1 = arith.constant 0 : index
    %0 = vector.load %arg2[%c0, %c0_0, %c0_1] : memref<1x8x20xf32, #tpu.memory_space<vmem>>, vector<1x8x20xf32>
    %1 = vector.shape_cast %0 : vector<1x8x20xf32> to vector<8x20xf32>
    %c0_2 = arith.constant 0 : index
    %c0_3 = arith.constant 0 : index
    %2 = vector.load %arg3[%c0_2, %c0_3] : memref<20x32xf32, #tpu.memory_space<vmem>>, vector<20x32xf32>
    %cst = arith.constant dense<0.000000e+00> : vector<8x32xf32>
    %3 = tpu.matmul %1, %2, %cst {dimension_numbers = #tpu.dot_dimension_numbers<[1], [0], [0], [1], [0, 0, 1, 1], [], []>} : vector<8x20xf32>, vector<20x32xf32>, vector<8x32xf32> -> vector<8x32xf32>
    %c0_4 = arith.constant 0 : index
    %c0_5 = arith.constant 0 : index
    %4 = vector.load %arg4[%c0_4, %c0_5] : memref<1x32xf32, #tpu.memory_space<vmem>>, vector<1x32xf32>
    %5 = vector.broadcast %4 : vector<1x32xf32> to vector<8x32xf32>
    %6 = arith.addf %3, %5 : vector<8x32xf32>
    %7 = arith.mulf %6, %6 : vector<8x32xf32>
    %8 = arith.mulf %6, %7 : vector<8x32xf32>
    %cst_6 = arith.constant 4.471500e-02 : f32
    %9 = vector.broadcast %cst_6 : f32 to vector<8x32xf32>
    %10 = arith.mulf %9, %8 : vector<8x32xf32>
    %11 = arith.addf %6, %10 : vector<8x32xf32>
    %cst_7 = arith.constant 0.797884583 : f32
    %12 = vector.broadcast %cst_7 : f32 to vector<8x32xf32>
    %13 = arith.mulf %12, %11 : vector<8x32xf32>
    %14 = math.tanh %13 : vector<8x32xf32>
    %cst_8 = arith.constant 1.000000e+00 : f32
    %15 = vector.broadcast %cst_8 : f32 to vector<8x32xf32>
    %16 = arith.addf %15, %14 : vector<8x32xf32>
    %cst_9 = arith.constant 5.000000e-01 : f32
    %17 = vector.broadcast %cst_9 : f32 to vector<8x32xf32>
    %18 = arith.mulf %17, %16 : vector<8x32xf32>
    %19 = arith.mulf %6, %18 : vector<8x32xf32>
    %cst_10 = arith.constant dense<0.000000e+00> : vector<8xf32>
    %20 = vector.multi_reduction <add>, %19, %cst_10 [1] : vector<8x32xf32> to vector<8xf32>
    %21 = vector.shape_cast %20 : vector<8xf32> to vector<8x1xf32>
    %cst_11 = arith.constant 3.200000e+01 : f32
    %22 = vector.broadcast %cst_11 : f32 to vector<8x1xf32>
    %23 = arith.divf %21, %22 : vector<8x1xf32>
    %24 = vector.broadcast %23 : vector<8x1xf32> to vector<8x32xf32>
    %25 = arith.subf %19, %24 : vector<8x32xf32>
    %26 = arith.mulf %25, %25 : vector<8x32xf32>
    %cst_12 = arith.constant dense<0.000000e+00> : vector<8xf32>
    %27 = vector.multi_reduction <add>, %26, %cst_12 [1] : vector<8x32xf32> to vector<8xf32>
    %28 = vector.shape_cast %27 : vector<8xf32> to vector<8x1xf32>
    %cst_13 = arith.constant 3.200000e+01 : f32
    %29 = vector.broadcast %cst_13 : f32 to vector<8x1xf32>
    %30 = arith.divf %28, %29 : vector<8x1xf32>
    %cst_14 = arith.constant 9.99999974E-6 : f32
    %31 = vector.broadcast %cst_14 : f32 to vector<8x1xf32>
    %32 = arith.addf %30, %31 : vector<8x1xf32>
    %33 = math.rsqrt %32 : vector<8x1xf32>
    %34 = vector.broadcast %33 : vector<8x1xf32> to vector<8x32xf32>
    %35 = arith.mulf %25, %34 : vector<8x32xf32>
    %c0_15 = arith.constant 0 : index
    %c0_16 = arith.constant 0 : index
    %36 = vector.load %arg5[%c0_15, %c0_16] : memref<1x32xf32, #tpu.memory_space<vmem>>, vector<1x32xf32>
    %37 = vector.broadcast %36 : vector<1x32xf32> to vector<8x32xf32>
    %38 = arith.mulf %35, %37 : vector<8x32xf32>
    %c0_17 = arith.constant 0 : index
    %c0_18 = arith.constant 0 : index
    %39 = vector.load %arg6[%c0_17, %c0_18] : memref<1x32xf32, #tpu.memory_space<vmem>>, vector<1x32xf32>
    %40 = vector.broadcast %39 : vector<1x32xf32> to vector<8x32xf32>
    %41 = arith.addf %38, %40 : vector<8x32xf32>
    %c0_19 = arith.constant 0 : index
    %c0_20 = arith.constant 0 : index
    %c0_21 = arith.constant 0 : index
    %42 = vector.load %arg7[%c0_19, %c0_20, %c0_21] : memref<1x8x32xf32, #tpu.memory_space<vmem>>, vector<1x8x32xf32>
    %43 = vector.shape_cast %42 : vector<1x8x32xf32> to vector<8x32xf32>
    %44 = vector.shape_cast %41 : vector<8x32xf32> to vector<1x8x32xf32>
    tpu.vector_store %arg7[%c0_19, %c0_20, %c0_21], %44 {strides = array<i32>} : memref<1x8x32xf32, #tpu.memory_space<vmem>>, vector<1x8x32xf32>,
    return
  }
  func.func @transform_0(%arg0: i32, %arg1: i32) -> (i32, i32, i32) {
    %c0_i32 = arith.constant 0 : i32
    %c0_i32_0 = arith.constant 0 : i32
    return %arg0, %arg1, %c0_i32 : i32, i32, i32
  }
  func.func @transform_1(%arg0: i32, %arg1: i32) -> (i32, i32) {
    %c0_i32 = arith.constant 0 : i32
    %c0_i32_0 = arith.constant 0 : i32
    %c0_i32_1 = arith.constant 0 : i32
    return %c0_i32, %c0_i32_0 : i32, i32
  }
  func.func @transform_2(%arg0: i32, %arg1: i32) -> (i32, i32) {
    %c0_i32 = arith.constant 0 : i32
    %c0_i32_0 = arith.constant 0 : i32
    %c0_i32_1 = arith.constant 0 : i32
    return %c0_i32, %c0_i32_0 : i32, i32
  }
  func.func @transform_3(%arg0: i32, %arg1: i32) -> (i32, i32) {
    %c0_i32 = arith.constant 0 : i32
    %c0_i32_0 = arith.constant 0 : i32
    %c0_i32_1 = arith.constant 0 : i32
    return %c0_i32, %c0_i32_0 : i32, i32
  }
  func.func @transform_4(%arg0: i32, %arg1: i32) -> (i32, i32) {
    %c0_i32 = arith.constant 0 : i32
    %c0_i32_0 = arith.constant 0 : i32
    %c0_i32_1 = arith.constant 0 : i32
    return %c0_i32, %c0_i32_0 : i32, i32
  }
  func.func @transform_5(%arg0: i32, %arg1: i32) -> (i32, i32, i32) {
    %c0_i32 = arith.constant 0 : i32
    %c0_i32_0 = arith.constant 0 : i32
    return %arg0, %arg1, %c0_i32 : i32, i32, i32
  }
}

module attributes {stable_mosaic.version = 11 : i64} {
  func.func @_strided_conv_kernel(%arg0: i32, %arg1: i32, %arg2: i32, %arg3: memref<1x6x128xf32, #tpu.memory_space<vmem>>, %arg4: memref<2x128x64xf32, #tpu.memory_space<vmem>>, %arg5: memref<32x64xf32, #tpu.memory_space<vmem>>, %arg6: memref<1x4x64xf32, #tpu.memory_space<vmem>>) attributes {dimension_semantics = [#tpu.dimension_semantics<parallel>, #tpu.dimension_semantics<parallel>, #tpu.dimension_semantics<parallel>], iteration_bounds = array<i64: 2, 1, 1>, scalar_prefetch = 0 : i64, scratch_operands = 0 : i64, tpu.core_type = #tpu.core_type<tc>, window_params = [{transform_indices = @transform_0, window_bounds = array<i64: 1, 6, 128>}, {transform_indices = @transform_1, window_bounds = array<i64: 2, 128, 64>}, {transform_indices = @transform_2, window_bounds = array<i64: 32, 64>}, {transform_indices = @transform_3, window_bounds = array<i64: 1, 4, 64>}]} {
    %c4_i32 = arith.constant 4 : i32
    %0 = arith.muli %arg1, %c4_i32 : i32
    %1 = tpu.assume_multiple %0, 4 : i32
    %c0 = arith.constant 0 : index
    %2 = arith.index_cast %1 : i32 to index
    %c0_0 = arith.constant 0 : index
    %3 = vector.load %arg3[%c0, %2, %c0_0] : memref<1x6x128xf32, #tpu.memory_space<vmem>>, vector<1x4x128xf32>
    %4 = vector.shape_cast %3 : vector<1x4x128xf32> to vector<4x128xf32>
    %c0_1 = arith.constant 0 : index
    %c0_2 = arith.constant 0 : index
    %c0_3 = arith.constant 0 : index
    %5 = vector.load %arg4[%c0_1, %c0_2, %c0_3] : memref<2x128x64xf32, #tpu.memory_space<vmem>>, vector<1x128x64xf32>
    %6 = vector.shape_cast %5 : vector<1x128x64xf32> to vector<128x64xf32>
    %cst = arith.constant dense<0.000000e+00> : vector<4x64xf32>
    %7 = tpu.matmul %4, %6, %cst {dimension_numbers = #tpu.dot_dimension_numbers<[1], [0], [0], [1], [0, 0, 1, 1], [], []>} : vector<4x128xf32>, vector<128x64xf32>, vector<4x64xf32> -> vector<4x64xf32>
    %c1_i32 = arith.constant 1 : i32
    %8 = arith.addi %1, %c1_i32 : i32
    %c0_4 = arith.constant 0 : index
    %9 = arith.index_cast %8 : i32 to index
    %c0_5 = arith.constant 0 : index
    %10 = vector.load %arg3[%c0_4, %9, %c0_5] : memref<1x6x128xf32, #tpu.memory_space<vmem>>, vector<1x4x128xf32>
    %11 = vector.shape_cast %10 : vector<1x4x128xf32> to vector<4x128xf32>
    %c1 = arith.constant 1 : index
    %c0_6 = arith.constant 0 : index
    %c0_7 = arith.constant 0 : index
    %12 = vector.load %arg4[%c1, %c0_6, %c0_7] : memref<2x128x64xf32, #tpu.memory_space<vmem>>, vector<1x128x64xf32>
    %13 = vector.shape_cast %12 : vector<1x128x64xf32> to vector<128x64xf32>
    %cst_8 = arith.constant dense<0.000000e+00> : vector<4x64xf32>
    %14 = tpu.matmul %11, %13, %cst_8 {dimension_numbers = #tpu.dot_dimension_numbers<[1], [0], [0], [1], [0, 0, 1, 1], [], []>} : vector<4x128xf32>, vector<128x64xf32>, vector<4x64xf32> -> vector<4x64xf32>
    %15 = arith.addf %7, %14 : vector<4x64xf32>
    %c2_i32 = arith.constant 2 : i32
    %16 = arith.addi %1, %c2_i32 : i32
    %c0_9 = arith.constant 0 : index
    %17 = arith.index_cast %16 : i32 to index
    %c0_10 = arith.constant 0 : index
    %18 = vector.load %arg3[%c0_9, %17, %c0_10] : memref<1x6x128xf32, #tpu.memory_space<vmem>>, vector<1x4x128xf32>
    %19 = vector.shape_cast %18 : vector<1x4x128xf32> to vector<4x128xf32>
    %20 = vector.extract_strided_slice %19 {offsets = [0, 0], sizes = [4, 32], strides = [1, 1]} : vector<4x128xf32> to vector<4x32xf32>
    %c0_11 = arith.constant 0 : index
    %c0_12 = arith.constant 0 : index
    %21 = vector.load %arg5[%c0_11, %c0_12] : memref<32x64xf32, #tpu.memory_space<vmem>>, vector<32x64xf32>
    %cst_13 = arith.constant dense<0.000000e+00> : vector<4x64xf32>
    %22 = tpu.matmul %20, %21, %cst_13 {dimension_numbers = #tpu.dot_dimension_numbers<[1], [0], [0], [1], [0, 0, 1, 1], [], []>} : vector<4x32xf32>, vector<32x64xf32>, vector<4x64xf32> -> vector<4x64xf32>
    %23 = arith.addf %15, %22 : vector<4x64xf32>
    %c0_14 = arith.constant 0 : index
    %c0_15 = arith.constant 0 : index
    %c0_16 = arith.constant 0 : index
    %24 = vector.load %arg6[%c0_14, %c0_15, %c0_16] : memref<1x4x64xf32, #tpu.memory_space<vmem>>, vector<1x4x64xf32>
    %25 = vector.shape_cast %24 : vector<1x4x64xf32> to vector<4x64xf32>
    %26 = vector.shape_cast %23 : vector<4x64xf32> to vector<1x4x64xf32>
    tpu.vector_store %arg6[%c0_14, %c0_15, %c0_16], %26 {strides = array<i32>} : memref<1x4x64xf32, #tpu.memory_space<vmem>>, vector<1x4x64xf32>,
    return
  }
  func.func @transform_0(%arg0: i32, %arg1: i32, %arg2: i32) -> (i32, i32, i32) {
    %c0_i32 = arith.constant 0 : i32
    %c0_i32_0 = arith.constant 0 : i32
    %c0_i32_1 = arith.constant 0 : i32
    return %arg0, %c0_i32, %c0_i32_0 : i32, i32, i32
  }
  func.func @transform_1(%arg0: i32, %arg1: i32, %arg2: i32) -> (i32, i32, i32) {
    %c0_i32 = arith.constant 0 : i32
    %c0_i32_0 = arith.constant 0 : i32
    %c0_i32_1 = arith.constant 0 : i32
    return %c0_i32, %c0_i32_0, %arg2 : i32, i32, i32
  }
  func.func @transform_2(%arg0: i32, %arg1: i32, %arg2: i32) -> (i32, i32) {
    %c0_i32 = arith.constant 0 : i32
    %c0_i32_0 = arith.constant 0 : i32
    return %c0_i32, %arg2 : i32, i32
  }
  func.func @transform_3(%arg0: i32, %arg1: i32, %arg2: i32) -> (i32, i32, i32) {
    %c0_i32 = arith.constant 0 : i32
    return %arg0, %arg1, %arg2 : i32, i32, i32
  }
}

</mosaic_0001>

<llo_original>
// kernel: time_embedding_forward.2
$region0: #{time_embedding_forward.2}
  #allocation0 [shape = 'u32[]', space=smem, size = 0x4, offset = 0x4, fixed_abs, tag = 'smem constant byte address 0x4 - core index']
  #allocation1 [shape = 'u32[144,128]{1,0:T(1,128)}', space=vmem, size = 0x12000, scoped, tag = 'internal scratch']
  %s0 = inlined_call_operand.vmem [shape: f32[2,16,20], index: 0, kind: input, shape index: {}]
  %s1 = inlined_call_operand.vmem [shape: f32[20,32], index: 1, kind: input, shape index: {}]
  %s2 = inlined_call_operand.vmem [shape: f32[1,32], index: 2, kind: input, shape index: {}]
  %s3 = inlined_call_operand.vmem [shape: f32[1,32], index: 3, kind: input, shape index: {}]
  %s4 = inlined_call_operand.vmem [shape: f32[1,32], index: 4, kind: input, shape index: {}]
  %s5 = inlined_call_operand.vmem [shape: f32[2,16,32], index: 5, kind: output, shape index: {}]
  %s6 = sld [smem:[#allocation0]]
  $region53: #{time_embedding_forward.2} parent=0
    _
  %s8 = ssub.s32 1, %s6
  %s9 = scalar_select 0, %s8, %s6
  loop: start=0, step=1, limit=6
  $region2: #{time_embedding_forward.2} parent=0 // loop_pre_header
    _
  $region3: #{time_embedding_forward.2} parent=0 // loop_header
    %s11 = sphi 0, %s15
    %p12 = scmp.ge.s32.totalorder %s11, 6
    %s18 = sphi 0, %s30
    %s19 = sphi 0, %s26
    %s20 = sphi 0, %s18
    %s21 = sphi 0, %s19
    %s22 = sphi 0, %s20
    %s23 = sphi 0, %s21
    %s35 = sphi 0, %s37
    %s38 = sphi 0, %s35
    %s39 = sphi 0, %s38
    %s55 = sphi 0, %s39
    %s59 = sphi 0, %s59
    %s61 = sphi 0, %s59
    %s62 = sphi 0, %s61
    %s76 = sphi 0, %s62
    %s80 = sphi 0, %s80
    %s82 = sphi 0, %s80
    %s83 = sphi 0, %s82
    %s97 = sphi 0, %s83
    %s101 = sphi 0, %s101
    %s103 = sphi 0, %s101
    %s104 = sphi 0, %s103
    %s118 = sphi 0, %s104
    %s122 = sphi 0, %s122
    %s124 = sphi 0, %s122
    %s125 = sphi 0, %s124
    %s139 = sphi 0, %s125
    %s147 = sphi 0, %s149
    %s150 = sphi 0, %s147
    %s151 = sphi 0, %s150
    %s167 = sphi 0, %s151
  $region4: #{time_embedding_forward.2} parent=0 // loop_header_branch
    %14 = sbr.rel (%p12) target = $region8
  $region5: #{time_embedding_forward.2} parent=0 // loop_body
    %s16 = ssub.s32 %s11, 1
    %s17 = ssub.s32 %s11, 2
    %s24 = sadd.s32 1, %s19
    %p25 = scmp.ge.s32.totalorder %s24, 2
    %s26 = scalar_select %p25, 0, %s24
    %s27 = sadd.s32 1, %s18
    %s28 = scalar_select %p25, %s27, %s18
    %p29 = scmp.ge.s32.totalorder %s28, 2
    %s30 = scalar_select %p29, 0, %s28
    %s31 = ssub.s32 %s18, %s30
    %s32 = ssub.s32 %s19, %s26
    %s33 = sor.u32 %s31, %s32
    %p34 = scmp.eq.s32.totalorder %s33, 0
    %s36 = sadd.s32 %s35, 1
    %s37 = scalar_select %p34, %s35, %s36
    %p40 = pneg %p34
    %p41 = scmp.eq.s32.totalorder %s11, 3
    %p42 = por %p40, %p41
    %p43 = scmp.ne.s32.totalorder %s35, %s38
    %p44 = scmp.eq.s32.totalorder %s11, 0
    %p45 = por %p43, %p44
    %p46 = scmp.ne.s32.totalorder %s35, %s38
    %p47 = scmp.eq.s32.totalorder %s16, 3
    %p48 = por %p46, %p47
    %p49 = scmp.ne.s32.totalorder %s38, %s39
    %p50 = scmp.eq.s32.totalorder %s16, 0
    %p51 = por %p49, %p50
    %p52 = scmp.ne.s32.totalorder %s38, %s39
    %p53 = scmp.eq.s32.totalorder %s17, 3
    %p54 = por %p52, %p53
    %p56 = scmp.ne.s32.totalorder %s39, %s55
    %p57 = scmp.eq.s32.totalorder %s17, 0
    %p58 = por %p56, %p57
    %s60 = sadd.s32 %s59, 1
    %p63 = scmp.eq.s32.totalorder %s11, 3
    %p64 = scmp.ne.s32.totalorder %s59, %s61
    %p65 = scmp.eq.s32.totalorder %s11, 0
    %p66 = por %p64, %p65
    %p67 = scmp.ne.s32.totalorder %s59, %s61
    %p68 = scmp.eq.s32.totalorder %s16, 3
    %p69 = por %p67, %p68
    %p70 = scmp.ne.s32.totalorder %s61, %s62
    %p71 = scmp.eq.s32.totalorder %s16, 0
    %p72 = por %p70, %p71
    %p73 = scmp.ne.s32.totalorder %s61, %s62
    %p74 = scmp.eq.s32.totalorder %s17, 3
    %p75 = por %p73, %p74
    %p77 = scmp.ne.s32.totalorder %s62, %s76
    %p78 = scmp.eq.s32.totalorder %s17, 0
    %p79 = por %p77, %p78
    %s81 = sadd.s32 %s80, 1
    %p84 = scmp.eq.s32.totalorder %s11, 3
    %p85 = scmp.ne.s32.totalorder %s80, %s82
    %p86 = scmp.eq.s32.totalorder %s11, 0
    %p87 = por %p85, %p86
    %p88 = scmp.ne.s32.totalorder %s80, %s82
    %p89 = scmp.eq.s32.totalorder %s16, 3
    %p90 = por %p88, %p89
    %p91 = scmp.ne.s32.totalorder %s82, %s83
    %p92 = scmp.eq.s32.totalorder %s16, 0
    %p93 = por %p91, %p92
    %p94 = scmp.ne.s32.totalorder %s82, %s83
    %p95 = scmp.eq.s32.totalorder %s17, 3
    %p96 = por %p94, %p95
    %p98 = scmp.ne.s32.totalorder %s83, %s97
    %p99 = scmp.eq.s32.totalorder %s17, 0
    %p100 = por %p98, %p99
    %s102 = sadd.s32 %s101, 1
    %p105 = scmp.eq.s32.totalorder %s11, 3
    %p106 = scmp.ne.s32.totalorder %s101, %s103
    %p107 = scmp.eq.s32.totalorder %s11, 0
    %p108 = por %p106, %p107
    %p109 = scmp.ne.s32.totalorder %s101, %s103
    %p110 = scmp.eq.s32.totalorder %s16, 3
    %p111 = por %p109, %p110
    %p112 = scmp.ne.s32.totalorder %s103, %s104
    %p113 = scmp.eq.s32.totalorder %s16, 0
    %p114 = por %p112, %p113
    %p115 = scmp.ne.s32.totalorder %s103, %s104
    %p116 = scmp.eq.s32.totalorder %s17, 3
    %p117 = por %p115, %p116
    %p119 = scmp.ne.s32.totalorder %s104, %s118
    %p120 = scmp.eq.s32.totalorder %s17, 0
    %p121 = por %p119, %p120
    %s123 = sadd.s32 %s122, 1
    %p126 = scmp.eq.s32.totalorder %s11, 3
    %p127 = scmp.ne.s32.totalorder %s122, %s124
    %p128 = scmp.eq.s32.totalorder %s11, 0
    %p129 = por %p127, %p128
    %p130 = scmp.ne.s32.totalorder %s122, %s124
    %p131 = scmp.eq.s32.totalorder %s16, 3
    %p132 = por %p130, %p131
    %p133 = scmp.ne.s32.totalorder %s124, %s125
    %p134 = scmp.eq.s32.totalorder %s16, 0
    %p135 = por %p133, %p134
    %p136 = scmp.ne.s32.totalorder %s124, %s125
    %p137 = scmp.eq.s32.totalorder %s17, 3
    %p138 = por %p136, %p137
    %p140 = scmp.ne.s32.totalorder %s125, %s139
    %p141 = scmp.eq.s32.totalorder %s17, 0
    %p142 = por %p140, %p141
    %s143 = ssub.s32 %s18, %s30
    %s144 = ssub.s32 %s19, %s26
    %s145 = sor.u32 %s143, %s144
    %p146 = scmp.eq.s32.totalorder %s145, 0
    %s148 = sadd.s32 %s147, 1
    %s149 = scalar_select %p146, %s147, %s148
    %p152 = pneg %p146
    %p153 = scmp.eq.s32.totalorder %s11, 3
    %p154 = por %p152, %p153
    %p155 = scmp.ne.s32.totalorder %s147, %s150
    %p156 = scmp.eq.s32.totalorder %s11, 0
    %p157 = por %p155, %p156
    %p158 = scmp.ne.s32.totalorder %s147, %s150
    %p159 = scmp.eq.s32.totalorder %s16, 3
    %p160 = por %p158, %p159
    %p161 = scmp.ne.s32.totalorder %s150, %s151
    %p162 = scmp.eq.s32.totalorder %s16, 0
    %p163 = por %p161, %p162
    %p164 = scmp.ne.s32.totalorder %s150, %s151
    %p165 = scmp.eq.s32.totalorder %s17, 3
    %p166 = por %p164, %p165
    %p168 = scmp.ne.s32.totalorder %s151, %s167
    %p169 = scmp.eq.s32.totalorder %s17, 0
    %p170 = por %p168, %p169
    %p171 = scmp.le.s32.totalorder 1, %s11
    %p172 = scmp.lt.s32.totalorder %s11, 5
    %p173 = pnand %p171, %p172
    %p174 = pneg %p173
    // Predicated region
    $region9: #{time_embedding_forward.2} parent=5 // pred_check
      _
    $region10: #{time_embedding_forward.2} parent=5 // pred_check_branch
      %176 = sbr.rel (%p173) target = $region12
    $region11: #{time_embedding_forward.2} parent=5 // pred_region
      %s177 = ssub.s32 %s11, 1
      // Predicated region
      $region13: #{time_embedding_forward.2} parent=11 // pred_check
        %p178 = pneg %p72
      $region14: #{time_embedding_forward.2} parent=11 // pred_check_branch
        %180 = sbr.rel (%p178) target = $region16
      $region15: #{time_embedding_forward.2} parent=11 // pred_region
        _
      $region16: #{time_embedding_forward.2} parent=11 // pred_fallthru
        _
      // Predicated region
      $region17: #{time_embedding_forward.2} parent=11 // pred_check
        %p181 = pneg %p93
      $region18: #{time_embedding_forward.2} parent=11 // pred_check_branch
        %183 = sbr.rel (%p181) target = $region20
      $region19: #{time_embedding_forward.2} parent=11 // pred_region
        _
      $region20: #{time_embedding_forward.2} parent=11 // pred_fallthru
        _
      // Predicated region
      $region21: #{time_embedding_forward.2} parent=11 // pred_check
        %p184 = pneg %p114
      $region22: #{time_embedding_forward.2} parent=11 // pred_check_branch
        %186 = sbr.rel (%p184) target = $region24
      $region23: #{time_embedding_forward.2} parent=11 // pred_region
        _
      $region24: #{time_embedding_forward.2} parent=11 // pred_fallthru
        _
      // Predicated region
      $region25: #{time_embedding_forward.2} parent=11 // pred_check
        %p187 = pneg %p135
      $region26: #{time_embedding_forward.2} parent=11 // pred_check_branch
        %189 = sbr.rel (%p187) target = $region28
      $region27: #{time_embedding_forward.2} parent=11 // pred_region
        _
      $region28: #{time_embedding_forward.2} parent=11 // pred_fallthru
        _
    $region12: #{time_embedding_forward.2} parent=5 // pred_fallthru
      _
    %p190 = scmp.lt.s32.totalorder %s11, 4
    // Predicated region
    $region29: #{time_embedding_forward.2} parent=5 // pred_check
      %p191 = pneg %p190
    $region30: #{time_embedding_forward.2} parent=5 // pred_check_branch
      %193 = sbr.rel (%p191) target = $region32
    $region31: #{time_embedding_forward.2} parent=5 // pred_region
      // Predicated region
      $region33: #{time_embedding_forward.2} parent=31 // pred_check
        %p194 = pneg %p45
      $region34: #{time_embedding_forward.2} parent=31 // pred_check_branch
        %196 = sbr.rel (%p194) target = $region36
      $region35: #{time_embedding_forward.2} parent=31 // pred_region
        %p197 = scmp.lt.s32.totalorder %s18, 1
        %s198 = scalar_select %p197, %s18, 1
        %p199 = scmp.lt.s32.totalorder %s19, 1
        %s200 = scalar_select %p199, %s19, 1
        %s201 = smul.addr %s198, 2
        %s202 = sadd.s32 %s200, %s201
        %s203 = smul.addr %s202, 8
        %s204 = scalar_lea.vmem %s0, %s203
      $region36: #{time_embedding_forward.2} parent=31 // pred_fallthru
        _
    $region32: #{time_embedding_forward.2} parent=5 // pred_fallthru
      _
    %p205 = scmp.le.s32.totalorder 1, %s11
    %p206 = scmp.lt.s32.totalorder %s11, 5
    %p207 = pnand %p205, %p206
    %p208 = pneg %p207
    // Predicated region
    $region37: #{time_embedding_forward.2} parent=5 // pred_check
      _
    $region38: #{time_embedding_forward.2} parent=5 // pred_check_branch
      %210 = sbr.rel (%p207) target = $region40
    $region39: #{time_embedding_forward.2} parent=5 // pred_region
      %s211 = ssub.s32 %s11, 1
      %p212 = scmp.lt.s32.totalorder %s20, 1
      %s213 = scalar_select %p212, %s20, 1
      %p214 = scmp.lt.s32.totalorder %s21, 1
      %s215 = scalar_select %p214, %s21, 1
      %s216 = smul.addr %s213, 2
      %s217 = sadd.s32 %s215, %s216
      %s218 = smul.addr %s217, 8
      %s219 = scalar_lea.vmem %s0, %s218
      %p220 = pneg %p51
      %p221 = pneg %p48
      %p222 = pneg %p72
      %p223 = pneg %p69
      %p224 = pneg %p93
      %p225 = pneg %p90
      %p226 = pneg %p114
      %p227 = pneg %p111
      %p228 = pneg %p135
      %p229 = pneg %p132
      %p230 = pneg %p163
      %p231 = pneg %p160
      %p232 = scmp.lt.s32.totalorder %s20, 1
      %s233 = scalar_select %p232, %s20, 1
      %p234 = scmp.lt.s32.totalorder %s21, 1
      %s235 = scalar_select %p234, %s21, 1
      %s236 = smul.addr %s233, 2
      %s237 = sadd.s32 %s235, %s236
      %s238 = smul.addr %s237, 8
      %s239 = scalar_lea.vmem %s5, %s238
      %p240 = scmp.lt.s32.totalorder %s20, 1
      %s241 = scalar_select %p240, %s20, 1
      %p242 = scmp.lt.s32.totalorder %s21, 1
      %s243 = scalar_select %p242, %s21, 1
      %s244 = smul.addr %s241, 2
      %s245 = sadd.s32 %s243, %s244
      %s246 = smul.addr %s245, 8
      %s247 = scalar_lea.vmem %s0, %s246
      %p248 = scmp.lt.s32.totalorder %s20, 1
      %s249 = scalar_select %p248, %s20, 1
      %p250 = scmp.lt.s32.totalorder %s21, 1
      %s251 = scalar_select %p250, %s21, 1
      %s252 = smul.addr %s249, 2
      %s253 = sadd.s32 %s251, %s252
      %s254 = smul.addr %s253, 8
      %s255 = scalar_lea.vmem %s5, %s254
      %v256 = vld [vmem:[%s247] sm:$0xff]
      %v257 = vld [vmem:[%s1] sm:$0xff]
      %v258 = vld [vmem:[%s1 + $0x8] sm:$0xff]
      %v259 = vld [vmem:[%s1 + $0x10] sm:$0xf]
      %v260 = vld [vmem:[%s2] sm:$0x1]
      %v262 = vlaneseq
      %v263 = vshrl.u32 %v262, 7
      %v264 = vsub.s32 0, %v263
      %v265 = vrot.slane %v260, %v264
      %vm267 = vcmask 162816
      %v269 = vsel %vm267, %v256, 0
      %vm271 = vcmask 1043456
      %v273 = vsel %vm271, %v259, 0
      %275 = vmatprep.subr.mxu0 0.0
      %276 = vmatpush1.msra.mxu0 0.0
      %277 = vmatprep.subr.mxu0 0.0
      %278 = vmatpush1.msra.mxu0 0.0
      %279 = vmatprep.subr.mxu0 0.0
      %280 = vmatpush1.msra.mxu0 0.0
      %281 = vmatprep.subr.mxu0 0.0
      %282 = vmatpush1.msra.mxu0 0.0
      %283 = vmatprep.subr.mxu0 0.0
      %284 = vmatpush1.msra.mxu0 0.0
      %285 = vmatprep.subr.mxu0 0.0
      %286 = vmatpush1.msra.mxu0 0.0
      %287 = vmatprep.subr.mxu0 0.0
      %288 = vmatpush1.msra.mxu0 0.0
      %289 = vmatprep.subr.mxu0 0.0
      %290 = vmatpush1.msra.mxu0 0.0
      %291 = vmatprep.subr.mxu0 0.0
      %292 = vmatpush1.msra.mxu0 0.0
      %293 = vmatprep.subr.mxu0 0.0
      %294 = vmatpush1.msra.mxu0 0.0
      %295 = vmatprep.subr.mxu0 0.0
      %296 = vmatpush1.msra.mxu0 0.0
      %297 = vmatprep.subr.mxu0 0.0
      %298 = vmatpush1.msra.mxu0 0.0
      %299 = vmatprep.subr.mxu0 0.0
      %300 = vmatpush1.msra.mxu0 0.0
      %301 = vmatprep.subr.mxu0 0.0
      %302 = vmatpush1.msra.mxu0 %v273
      %303 = vmatprep.subr.mxu0 0.0
      %304 = vmatpush1.msra.mxu0 %v258
      %305 = vmatprep.subr.mxu0 0.0
      %306 = vmatpush1.msra.mxu0 %v257
      %307 = vmatprep.subr.mxu0 0.0
      %308 = vmatpush2.msra.mxu0 0.0
      %309 = vmatprep.subr.mxu0 0.0
      %310 = vmatpush2.msra.mxu0 0.0
      %311 = vmatprep.subr.mxu0 0.0
      %312 = vmatpush2.msra.mxu0 0.0
      %313 = vmatprep.subr.mxu0 0.0
      %314 = vmatpush2.msra.mxu0 0.0
      %315 = vmatprep.subr.mxu0 0.0
      %316 = vmatpush2.msra.mxu0 0.0
      %317 = vmatprep.subr.mxu0 0.0
      %318 = vmatpush2.msra.mxu0 0.0
      %319 = vmatprep.subr.mxu0 0.0
      %320 = vmatpush2.msra.mxu0 0.0
      %321 = vmatprep.subr.mxu0 0.0
      %322 = vmatpush2.msra.mxu0 0.0
      %323 = vmatprep.subr.mxu0 0.0
      %324 = vmatpush2.msra.mxu0 0.0
      %325 = vmatprep.subr.mxu0 0.0
      %326 = vmatpush2.msra.mxu0 0.0
      %327 = vmatprep.subr.mxu0 0.0
      %328 = vmatpush2.msra.mxu0 0.0
      %329 = vmatprep.subr.mxu0 0.0
      %330 = vmatpush2.msra.mxu0 0.0
      %331 = vmatprep.subr.mxu0 0.0
      %332 = vmatpush2.msra.mxu0 0.0
      %333 = vmatprep.subr.mxu0 0.0
      %334 = vmatpush2.msra.mxu0 0.0
      %335 = vmatprep.subr.mxu0 0.0
      %336 = vmatpush2.msra.mxu0 0.0
      %337 = vmatprep.subr.mxu0 0.0
      %338 = vmatpush2.msra.mxu0 0.0
      %339 = vmatprep.mubr.f32.mxu0 0.0
      %340 = vmatmul.mubr.f32.gmra.mxu0 %v269
      %v341 = vpop.f32.mrf.mxu0
      %v342 = vadd.f32 %v265, %v341
      %v343 = vpop.f32.mrf.mxu0
      %344 = vdwg.mxu0
      %v345 = vmul.f32 %v342, %v342
      %v346 = vmul.f32 %v342, %v345
      %v347 = vmul.f32 %v346, 0.044715
      %v348 = vadd.f32 %v342, %v347
      %v349 = vmul.f32 %v348, 0.7978846
      %v350 = vtanh.pop %v349
      %v351 = vadd.f32 %v350, 1.0
      %v352 = vmul.f32 %v351, 0.5
      %v353 = vmul.f32 %v342, %v352
      %vm354 = vcmask 261120
      %v355 = vsel %vm354, %v353, 0.0
      %356 = vadd.xlane.f32.xlu0 %v355
      %v357 = vpop.xlane.xlu0 %356
      %v358 = vrcp.pop 32.0
      %v359 = vmul.f32 %v357, %v358
      %v360 = vsub.f32 %v353, %v359
      %v361 = vmul.f32 %v360, %v360
      %v362 = vsel %vm354, %v361, 0.0
      %363 = vadd.xlane.f32.xlu0 %v362
      %v364 = vpop.xlane.xlu0 %363
      %v365 = vmul.f32 %v364, %v358
      %v366 = vadd.f32 %v365, 1e-05
      %v367 = vrsqrt.pop %v366
      %v368 = vmul.f32 %v360, %v367
      %v369 = vld [vmem:[%s3] sm:$0x1]
      %v371 = vlaneseq
      %v372 = vshrl.u32 %v371, 7
      %v373 = vsub.s32 0, %v372
      %v374 = vrot.slane %v369, %v373
      %v376 = vmul.f32 %v368, %v374
      %v377 = vld [vmem:[%s4] sm:$0x1]
      %v379 = vlaneseq
      %v380 = vshrl.u32 %v379, 7
      %v381 = vsub.s32 0, %v380
      %v382 = vrot.slane %v377, %v381
      %v384 = vadd.f32 %v376, %v382
      %385 = vst.msk [vmem:[%s255] sm:$0xff] %vm354, %v384
      %p386 = scmp.lt.s32.totalorder %s20, 1
      %s387 = scalar_select %p386, %s20, 1
      %p388 = scmp.lt.s32.totalorder %s21, 1
      %s389 = scalar_select %p388, %s21, 1
      %s390 = smul.addr %s387, 2
      %s391 = sadd.s32 %s389, %s390
      %s392 = smul.addr %s391, 8
      %s393 = scalar_lea.vmem %s5, %s392
      // Predicated region
      $region41: #{time_embedding_forward.2} parent=39 // pred_check
        %p394 = pneg %p160
      $region42: #{time_embedding_forward.2} parent=39 // pred_check_branch
        %396 = sbr.rel (%p394) target = $region44
      $region43: #{time_embedding_forward.2} parent=39 // pred_region
        _
      $region44: #{time_embedding_forward.2} parent=39 // pred_fallthru
        _
    $region40: #{time_embedding_forward.2} parent=5 // pred_fallthru
      _
    %p397 = scmp.le.s32.totalorder 2, %s11
    // Predicated region
    $region45: #{time_embedding_forward.2} parent=5 // pred_check
      %p398 = pneg %p397
    $region46: #{time_embedding_forward.2} parent=5 // pred_check_branch
      %400 = sbr.rel (%p398) target = $region48
    $region47: #{time_embedding_forward.2} parent=5 // pred_region
      %s401 = ssub.s32 %s11, 2
      // Predicated region
      $region49: #{time_embedding_forward.2} parent=47 // pred_check
        %p402 = pneg %p166
      $region50: #{time_embedding_forward.2} parent=47 // pred_check_branch
        %404 = sbr.rel (%p402) target = $region52
      $region51: #{time_embedding_forward.2} parent=47 // pred_region
        %p405 = scmp.lt.s32.totalorder %s22, 1
        %s406 = scalar_select %p405, %s22, 1
        %p407 = scmp.lt.s32.totalorder %s23, 1
        %s408 = scalar_select %p407, %s23, 1
        %s409 = smul.addr %s406, 2
        %s410 = sadd.s32 %s408, %s409
        %s411 = smul.addr %s410, 8
        %s412 = scalar_lea.vmem %s5, %s411
      $region52: #{time_embedding_forward.2} parent=47 // pred_fallthru
        _
    $region48: #{time_embedding_forward.2} parent=5 // pred_fallthru
      _
  $region6: #{time_embedding_forward.2} parent=0 // loop_footer
    %s15 = sadd.s32 1, %s11
  $region7: #{time_embedding_forward.2} parent=0 // loop_footer_branch
    %10 = sbr.rel target = $region3
  $region8: #{time_embedding_forward.2} parent=0 // loop_exit
    _

// kernel: time_embedding_forward.3
$region0: #{time_embedding_forward.3}
  #allocation0 [shape = 'u32[]', space=smem, size = 0x4, offset = 0x4, fixed_abs, tag = 'smem constant byte address 0x4 - core index']
  #allocation1 [shape = 'u32[144,128]{1,0:T(1,128)}', space=vmem, size = 0x12000, scoped, tag = 'internal scratch']
  %s0 = inlined_call_operand.vmem [shape: f32[2,6,128], index: 0, kind: input, shape index: {}]
  %s1 = inlined_call_operand.vmem [shape: f32[2,128,64], index: 1, kind: input, shape index: {}]
  %s2 = inlined_call_operand.vmem [shape: f32[32,64], index: 2, kind: input, shape index: {}]
  %s3 = inlined_call_operand.hbm [shape: f32[2,4,64], index: 3, kind: output, shape index: {}]
  %s4 = sld [smem:[#allocation0]]
  $region45: #{time_embedding_forward.3} parent=0
    _
  %s6 = ssub.s32 1, %s4
  %s7 = scalar_select 0, %s6, %s4
  $region1: #{time_embedding_forward.3} parent=0
    #allocation2 [shape = 'u8[4096]{0}', space=vmem, size = 0x1000, scoped, tag = 'output window, operand 0']
    #allocation3 [shape = 's32[2]{0}', space=sflag, size = 0x8, scoped, tag = 'scoped memory for time_embedding_forward.3']
    %8 = vsyncpa [#allocation3], 0
    %s9 = scalar_lea.sflag [#allocation3], 1
    %10 = vsyncpa %s9, 0
    loop: start=0, step=1, limit=4
    $region2: #{time_embedding_forward.3} parent=1 // loop_pre_header
      _
    $region3: #{time_embedding_forward.3} parent=1 // loop_header
      %s12 = sphi 0, %s16
      %p13 = scmp.ge.s32.totalorder %s12, 4
      %s19 = sphi 0, %s38
      %s20 = sphi 0, %s34
      %s21 = sphi 0, %s30
      %s22 = sphi 0, %s19
      %s23 = sphi 0, %s20
      %s24 = sphi 0, %s21
      %s25 = sphi 0, %s22
      %s26 = sphi 0, %s23
      %s27 = sphi 0, %s24
      %s41 = sphi 0, %s43
      %s44 = sphi 0, %s41
      %s45 = sphi 0, %s44
      %s61 = sphi 0, %s45
      %s67 = sphi 0, %s69
      %s70 = sphi 0, %s67
      %s71 = sphi 0, %s70
      %s87 = sphi 0, %s71
      %s93 = sphi 0, %s95
      %s96 = sphi 0, %s93
      %s97 = sphi 0, %s96
      %s113 = sphi 0, %s97
      %s123 = sphi 0, %s125
      %s126 = sphi 0, %s123
      %s127 = sphi 0, %s126
      %s143 = sphi 0, %s127
    $region4: #{time_embedding_forward.3} parent=1 // loop_header_branch
      %15 = sbr.rel (%p13) target = $region8
    $region5: #{time_embedding_forward.3} parent=1 // loop_body
      %s17 = ssub.s32 %s12, 1
      %s18 = ssub.s32 %s12, 2
      %s28 = sadd.s32 1, %s21
      %p29 = scmp.ge.s32.totalorder %s28, 1
      %s30 = scalar_select %p29, 0, %s28
      %s31 = sadd.s32 1, %s20
      %s32 = scalar_select %p29, %s31, %s20
      %p33 = scmp.ge.s32.totalorder %s32, 1
      %s34 = scalar_select %p33, 0, %s32
      %s35 = sadd.s32 1, %s19
      %s36 = scalar_select %p33, %s35, %s19
      %p37 = scmp.ge.s32.totalorder %s36, 2
      %s38 = scalar_select %p37, 0, %s36
      %s39 = ssub.s32 %s19, %s38
      %p40 = scmp.eq.s32.totalorder %s39, 0
      %s42 = sadd.s32 %s41, 1
      %s43 = scalar_select %p40, %s41, %s42
      %p46 = pneg %p40
      %p47 = scmp.eq.s32.totalorder %s12, 1
      %p48 = por %p46, %p47
      %p49 = scmp.ne.s32.totalorder %s41, %s44
      %p50 = scmp.eq.s32.totalorder %s12, 0
      %p51 = por %p49, %p50
      %p52 = scmp.ne.s32.totalorder %s41, %s44
      %p53 = scmp.eq.s32.totalorder %s17, 1
      %p54 = por %p52, %p53
      %p55 = scmp.ne.s32.totalorder %s44, %s45
      %p56 = scmp.eq.s32.totalorder %s17, 0
      %p57 = por %p55, %p56
      %p58 = scmp.ne.s32.totalorder %s44, %s45
      %p59 = scmp.eq.s32.totalorder %s18, 1
      %p60 = por %p58, %p59
      %p62 = scmp.ne.s32.totalorder %s45, %s61
      %p63 = scmp.eq.s32.totalorder %s18, 0
      %p64 = por %p62, %p63
      %s65 = ssub.s32 %s21, %s30
      %p66 = scmp.eq.s32.totalorder %s65, 0
      %s68 = sadd.s32 %s67, 1
      %s69 = scalar_select %p66, %s67, %s68
      %p72 = pneg %p66
      %p73 = scmp.eq.s32.totalorder %s12, 1
      %p74 = por %p72, %p73
      %p75 = scmp.ne.s32.totalorder %s67, %s70
      %p76 = scmp.eq.s32.totalorder %s12, 0
      %p77 = por %p75, %p76
      %p78 = scmp.ne.s32.totalorder %s67, %s70
      %p79 = scmp.eq.s32.totalorder %s17, 1
      %p80 = por %p78, %p79
      %p81 = scmp.ne.s32.totalorder %s70, %s71
      %p82 = scmp.eq.s32.totalorder %s17, 0
      %p83 = por %p81, %p82
      %p84 = scmp.ne.s32.totalorder %s70, %s71
      %p85 = scmp.eq.s32.totalorder %s18, 1
      %p86 = por %p84, %p85
      %p88 = scmp.ne.s32.totalorder %s71, %s87
      %p89 = scmp.eq.s32.totalorder %s18, 0
      %p90 = por %p88, %p89
      %s91 = ssub.s32 %s21, %s30
      %p92 = scmp.eq.s32.totalorder %s91, 0
      %s94 = sadd.s32 %s93, 1
      %s95 = scalar_select %p92, %s93, %s94
      %p98 = pneg %p92
      %p99 = scmp.eq.s32.totalorder %s12, 1
      %p100 = por %p98, %p99
      %p101 = scmp.ne.s32.totalorder %s93, %s96
      %p102 = scmp.eq.s32.totalorder %s12, 0
      %p103 = por %p101, %p102
      %p104 = scmp.ne.s32.totalorder %s93, %s96
      %p105 = scmp.eq.s32.totalorder %s17, 1
      %p106 = por %p104, %p105
      %p107 = scmp.ne.s32.totalorder %s96, %s97
      %p108 = scmp.eq.s32.totalorder %s17, 0
      %p109 = por %p107, %p108
      %p110 = scmp.ne.s32.totalorder %s96, %s97
      %p111 = scmp.eq.s32.totalorder %s18, 1
      %p112 = por %p110, %p111
      %p114 = scmp.ne.s32.totalorder %s97, %s113
      %p115 = scmp.eq.s32.totalorder %s18, 0
      %p116 = por %p114, %p115
      %s117 = ssub.s32 %s19, %s38
      %s118 = ssub.s32 %s20, %s34
      %s119 = sor.u32 %s117, %s118
      %s120 = ssub.s32 %s21, %s30
      %s121 = sor.u32 %s119, %s120
      %p122 = scmp.eq.s32.totalorder %s121, 0
      %s124 = sadd.s32 %s123, 1
      %s125 = scalar_select %p122, %s123, %s124
      %p128 = pneg %p122
      %p129 = scmp.eq.s32.totalorder %s12, 1
      %p130 = por %p128, %p129
      %p131 = scmp.ne.s32.totalorder %s123, %s126
      %p132 = scmp.eq.s32.totalorder %s12, 0
      %p133 = por %p131, %p132
      %p134 = scmp.ne.s32.totalorder %s123, %s126
      %p135 = scmp.eq.s32.totalorder %s17, 1
      %p136 = por %p134, %p135
      %p137 = scmp.ne.s32.totalorder %s126, %s127
      %p138 = scmp.eq.s32.totalorder %s17, 0
      %p139 = por %p137, %p138
      %p140 = scmp.ne.s32.totalorder %s126, %s127
      %p141 = scmp.eq.s32.totalorder %s18, 1
      %p142 = por %p140, %p141
      %p144 = scmp.ne.s32.totalorder %s127, %s143
      %p145 = scmp.eq.s32.totalorder %s18, 0
      %p146 = por %p144, %p145
      %p147 = scmp.le.s32.totalorder 1, %s12
      %p148 = scmp.lt.s32.totalorder %s12, 3
      %p149 = pnand %p147, %p148
      %p150 = pneg %p149
      // Predicated region
      $region9: #{time_embedding_forward.3} parent=5 // pred_check
        _
      $region10: #{time_embedding_forward.3} parent=5 // pred_check_branch
        %152 = sbr.rel (%p149) target = $region12
      $region11: #{time_embedding_forward.3} parent=5 // pred_region
        %s153 = ssub.s32 %s12, 1
        // Predicated region
        $region13: #{time_embedding_forward.3} parent=11 // pred_check
          %p154 = pneg %p83
        $region14: #{time_embedding_forward.3} parent=11 // pred_check_branch
          %156 = sbr.rel (%p154) target = $region16
        $region15: #{time_embedding_forward.3} parent=11 // pred_region
          %p157 = scmp.lt.s32.totalorder %s24, 0
          %s158 = scalar_select %p157, %s24, 0
          %s159 = smul.addr %s158, 8
          %s160 = scalar_lea.vmem %s1, %s159
        $region16: #{time_embedding_forward.3} parent=11 // pred_fallthru
          _
        // Predicated region
        $region17: #{time_embedding_forward.3} parent=11 // pred_check
          %p161 = pneg %p109
        $region18: #{time_embedding_forward.3} parent=11 // pred_check_branch
          %163 = sbr.rel (%p161) target = $region20
        $region19: #{time_embedding_forward.3} parent=11 // pred_region
          %p164 = scmp.lt.s32.totalorder %s24, 0
          %s165 = scalar_select %p164, %s24, 0
          %s166 = smul.addr %s165, 8
          %s167 = scalar_lea.vmem %s2, %s166
        $region20: #{time_embedding_forward.3} parent=11 // pred_fallthru
          _
      $region12: #{time_embedding_forward.3} parent=5 // pred_fallthru
        _
      %p168 = scmp.lt.s32.totalorder %s12, 2
      // Predicated region
      $region21: #{time_embedding_forward.3} parent=5 // pred_check
        %p169 = pneg %p168
      $region22: #{time_embedding_forward.3} parent=5 // pred_check_branch
        %171 = sbr.rel (%p169) target = $region24
      $region23: #{time_embedding_forward.3} parent=5 // pred_region
        // Predicated region
        $region25: #{time_embedding_forward.3} parent=23 // pred_check
          %p172 = pneg %p51
        $region26: #{time_embedding_forward.3} parent=23 // pred_check_branch
          %174 = sbr.rel (%p172) target = $region28
        $region27: #{time_embedding_forward.3} parent=23 // pred_region
          %p175 = scmp.lt.s32.totalorder %s19, 1
          %s176 = scalar_select %p175, %s19, 1
          %s177 = smul.addr %s176, 8
          %s178 = scalar_lea.vmem %s0, %s177
        $region28: #{time_embedding_forward.3} parent=23 // pred_fallthru
          _
      $region24: #{time_embedding_forward.3} parent=5 // pred_fallthru
        _
      %p179 = scmp.le.s32.totalorder 1, %s12
      %p180 = scmp.lt.s32.totalorder %s12, 3
      %p181 = pnand %p179, %p180
      %p182 = pneg %p181
      // Predicated region
      $region29: #{time_embedding_forward.3} parent=5 // pred_check
        _
      $region30: #{time_embedding_forward.3} parent=5 // pred_check_branch
        %184 = sbr.rel (%p181) target = $region32
      $region31: #{time_embedding_forward.3} parent=5 // pred_region
        %s185 = ssub.s32 %s12, 1
        %p186 = scmp.lt.s32.totalorder %s22, 1
        %s187 = scalar_select %p186, %s22, 1
        %s188 = smul.addr %s187, 8
        %s189 = scalar_lea.vmem %s0, %s188
        %p190 = pneg %p57
        %p191 = pneg %p54
        %p192 = scmp.lt.s32.totalorder %s24, 0
        %s193 = scalar_select %p192, %s24, 0
        %s194 = smul.addr %s193, 8
        %s195 = scalar_lea.vmem %s1, %s194
        %p196 = pneg %p83
        %p197 = pneg %p80
        %p198 = scmp.lt.s32.totalorder %s24, 0
        %s199 = scalar_select %p198, %s24, 0
        %s200 = smul.addr %s199, 8
        %s201 = scalar_lea.vmem %s2, %s200
        %p202 = pneg %p109
        %p203 = pneg %p106
        %p204 = pneg %p139
        %p205 = pneg %p136
        %s206 = sand.u32 %s126, 1
        %s207 = scalar_lea.sflag [#allocation3], %s206
        %s208 = sand.u32 %s126, 1
        %s209 = smul.addr %s208, 4
        %s210 = scalar_lea.vmem [#allocation2], %s209
        %p211 = scmp.lt.s32.totalorder %s22, 1
        %s212 = scalar_select %p211, %s22, 1
        %s213 = smul.addr %s212, 8
        %s214 = scalar_lea.vmem %s0, %s213
        %p215 = scmp.lt.s32.totalorder %s24, 0
        %s216 = scalar_select %p215, %s24, 0
        %s217 = smul.addr %s216, 8
        %s218 = scalar_lea.vmem %s1, %s217
        %p219 = scmp.lt.s32.totalorder %s24, 0
        %s220 = scalar_select %p219, %s24, 0
        %s221 = smul.addr %s220, 8
        %s222 = scalar_lea.vmem %s2, %s221
        %s223 = smul.u32 %s23, 4
        %s224 = scalar_lea.vmem %s214, %s223
        %v225 = vld [vmem:[%s224] sm:$0xf]
        %v226 = vld [vmem:[%s218] sm:$0xff]
        %v227 = vld [vmem:[%s218 + $0x8] sm:$0xff]
        %v228 = vld [vmem:[%s218 + $0x10] sm:$0xff]
        %v229 = vld [vmem:[%s218 + $0x18] sm:$0xff]
        %v230 = vld [vmem:[%s218 + $0x20] sm:$0xff]
        %v231 = vld [vmem:[%s218 + $0x28] sm:$0xff]
        %v232 = vld [vmem:[%s218 + $0x30] sm:$0xff]
        %v233 = vld [vmem:[%s218 + $0x38] sm:$0xff]
        %v234 = vld [vmem:[%s218 + $0x40] sm:$0xff]
        %v235 = vld [vmem:[%s218 + $0x48] sm:$0xff]
        %v236 = vld [vmem:[%s218 + $0x50] sm:$0xff]
        %v237 = vld [vmem:[%s218 + $0x58] sm:$0xff]
        %v238 = vld [vmem:[%s218 + $0x60] sm:$0xff]
        %v239 = vld [vmem:[%s218 + $0x68] sm:$0xff]
        %v240 = vld [vmem:[%s218 + $0x70] sm:$0xff]
        %v241 = vld [vmem:[%s218 + $0x78] sm:$0xff]
        %s242 = sadd.s32 %s223, 1
        %s243 = scalar_lea.vmem %s214, %s242
        %v244 = vld [vmem:[%s243] sm:$0xf]
        %s245 = scalar_lea.vmem %s218, 128
        %v246 = vld [vmem:[%s245] sm:$0xff]
        %v247 = vld [vmem:[%s245 + $0x8] sm:$0xff]
        %v248 = vld [vmem:[%s245 + $0x10] sm:$0xff]
        %v249 = vld [vmem:[%s245 + $0x18] sm:$0xff]
        %v250 = vld [vmem:[%s245 + $0x20] sm:$0xff]
        %v251 = vld [vmem:[%s245 + $0x28] sm:$0xff]
        %v252 = vld [vmem:[%s245 + $0x30] sm:$0xff]
        %v253 = vld [vmem:[%s245 + $0x38] sm:$0xff]
        %v254 = vld [vmem:[%s245 + $0x40] sm:$0xff]
        %v255 = vld [vmem:[%s245 + $0x48] sm:$0xff]
        %v256 = vld [vmem:[%s245 + $0x50] sm:$0xff]
        %v257 = vld [vmem:[%s245 + $0x58] sm:$0xff]
        %v258 = vld [vmem:[%s245 + $0x60] sm:$0xff]
        %v259 = vld [vmem:[%s245 + $0x68] sm:$0xff]
        %v260 = vld [vmem:[%s245 + $0x70] sm:$0xff]
        %v261 = vld [vmem:[%s245 + $0x78] sm:$0xff]
        %262 = vmatprep.subr.mxu0 0.0
        %263 = vmatpush1.msra.mxu0 %v261
        %264 = vmatprep.subr.mxu0 0.0
        %265 = vmatpush1.msra.mxu0 %v260
        %266 = vmatprep.subr.mxu0 0.0
        %267 = vmatpush1.msra.mxu0 %v259
        %268 = vmatprep.subr.mxu0 0.0
        %269 = vmatpush1.msra.mxu0 %v258
        %270 = vmatprep.subr.mxu0 0.0
        %271 = vmatpush1.msra.mxu0 %v257
        %272 = vmatprep.subr.mxu0 0.0
        %273 = vmatpush1.msra.mxu0 %v256
        %274 = vmatprep.subr.mxu0 0.0
        %275 = vmatpush1.msra.mxu0 %v255
        %276 = vmatprep.subr.mxu0 0.0
        %277 = vmatpush1.msra.mxu0 %v254
        %278 = vmatprep.subr.mxu0 0.0
        %279 = vmatpush1.msra.mxu0 %v253
        %280 = vmatprep.subr.mxu0 0.0
        %281 = vmatpush1.msra.mxu0 %v252
        %282 = vmatprep.subr.mxu0 0.0
        %283 = vmatpush1.msra.mxu0 %v251
        %284 = vmatprep.subr.mxu0 0.0
        %285 = vmatpush1.msra.mxu0 %v250
        %286 = vmatprep.subr.mxu0 0.0
        %287 = vmatpush1.msra.mxu0 %v249
        %288 = vmatprep.subr.mxu0 0.0
        %289 = vmatpush1.msra.mxu0 %v248
        %290 = vmatprep.subr.mxu0 0.0
        %291 = vmatpush1.msra.mxu0 %v247
        %292 = vmatprep.subr.mxu0 0.0
        %293 = vmatpush1.msra.mxu0 %v246
        %294 = vmatprep.subr.mxu0 0.0
        %295 = vmatpush2.msra.mxu0 0.0
        %296 = vmatprep.subr.mxu0 0.0
        %297 = vmatpush2.msra.mxu0 0.0
        %298 = vmatprep.subr.mxu0 0.0
        %299 = vmatpush2.msra.mxu0 0.0
        %300 = vmatprep.subr.mxu0 0.0
        %301 = vmatpush2.msra.mxu0 0.0
        %302 = vmatprep.subr.mxu0 0.0
        %303 = vmatpush2.msra.mxu0 0.0
        %304 = vmatprep.subr.mxu0 0.0
        %305 = vmatpush2.msra.mxu0 0.0
        %306 = vmatprep.subr.mxu0 0.0
        %307 = vmatpush2.msra.mxu0 0.0
        %308 = vmatprep.subr.mxu0 0.0
        %309 = vmatpush2.msra.mxu0 0.0
        %310 = vmatprep.subr.mxu0 0.0
        %311 = vmatpush2.msra.mxu0 0.0
        %312 = vmatprep.subr.mxu0 0.0
        %313 = vmatpush2.msra.mxu0 0.0
        %314 = vmatprep.subr.mxu0 0.0
        %315 = vmatpush2.msra.mxu0 0.0
        %316 = vmatprep.subr.mxu0 0.0
        %317 = vmatpush2.msra.mxu0 0.0
        %318 = vmatprep.subr.mxu0 0.0
        %319 = vmatpush2.msra.mxu0 0.0
        %320 = vmatprep.subr.mxu0 0.0
        %321 = vmatpush2.msra.mxu0 0.0
        %322 = vmatprep.subr.mxu0 0.0
        %323 = vmatpush2.msra.mxu0 0.0
        %324 = vmatprep.subr.mxu0 0.0
        %325 = vmatpush2.msra.mxu0 0.0
        %326 = vmatprep.mubr.f32.mxu0 0.0
        %327 = vmatmul.mubr.f32.gmra.mxu0 %v244
        %v328 = vpop.f32.mrf.mxu0
        %v329 = vadd.f32 0.0, %v328
        %v330 = vpop.f32.mrf.mxu0
        %331 = vdwg.mxu0
        %332 = vmatprep.subr.mxu0 0.0
        %333 = vmatpush1.msra.mxu0 %v241
        %334 = vmatprep.subr.mxu0 0.0
        %335 = vmatpush1.msra.mxu0 %v240
        %336 = vmatprep.subr.mxu0 0.0
        %337 = vmatpush1.msra.mxu0 %v239
        %338 = vmatprep.subr.mxu0 0.0
        %339 = vmatpush1.msra.mxu0 %v238
        %340 = vmatprep.subr.mxu0 0.0
        %341 = vmatpush1.msra.mxu0 %v237
        %342 = vmatprep.subr.mxu0 0.0
        %343 = vmatpush1.msra.mxu0 %v236
        %344 = vmatprep.subr.mxu0 0.0
        %345 = vmatpush1.msra.mxu0 %v235
        %346 = vmatprep.subr.mxu0 0.0
        %347 = vmatpush1.msra.mxu0 %v234
        %348 = vmatprep.subr.mxu0 0.0
        %349 = vmatpush1.msra.mxu0 %v233
        %350 = vmatprep.subr.mxu0 0.0
        %351 = vmatpush1.msra.mxu0 %v232
        %352 = vmatprep.subr.mxu0 0.0
        %353 = vmatpush1.msra.mxu0 %v231
        %354 = vmatprep.subr.mxu0 0.0
        %355 = vmatpush1.msra.mxu0 %v230
        %356 = vmatprep.subr.mxu0 0.0
        %357 = vmatpush1.msra.mxu0 %v229
        %358 = vmatprep.subr.mxu0 0.0
        %359 = vmatpush1.msra.mxu0 %v228
        %360 = vmatprep.subr.mxu0 0.0
        %361 = vmatpush1.msra.mxu0 %v227
        %362 = vmatprep.subr.mxu0 0.0
        %363 = vmatpush1.msra.mxu0 %v226
        %364 = vmatprep.subr.mxu0 0.0
        %365 = vmatpush2.msra.mxu0 0.0
        %366 = vmatprep.subr.mxu0 0.0
        %367 = vmatpush2.msra.mxu0 0.0
        %368 = vmatprep.subr.mxu0 0.0
        %369 = vmatpush2.msra.mxu0 0.0
        %370 = vmatprep.subr.mxu0 0.0
        %371 = vmatpush2.msra.mxu0 0.0
        %372 = vmatprep.subr.mxu0 0.0
        %373 = vmatpush2.msra.mxu0 0.0
        %374 = vmatprep.subr.mxu0 0.0
        %375 = vmatpush2.msra.mxu0 0.0
        %376 = vmatprep.subr.mxu0 0.0
        %377 = vmatpush2.msra.mxu0 0.0
        %378 = vmatprep.subr.mxu0 0.0
        %379 = vmatpush2.msra.mxu0 0.0
        %380 = vmatprep.subr.mxu0 0.0
        %381 = vmatpush2.msra.mxu0 0.0
        %382 = vmatprep.subr.mxu0 0.0
        %383 = vmatpush2.msra.mxu0 0.0
        %384 = vmatprep.subr.mxu0 0.0
        %385 = vmatpush2.msra.mxu0 0.0
        %386 = vmatprep.subr.mxu0 0.0
        %387 = vmatpush2.msra.mxu0 0.0
        %388 = vmatprep.subr.mxu0 0.0
        %389 = vmatpush2.msra.mxu0 0.0
        %390 = vmatprep.subr.mxu0 0.0
        %391 = vmatpush2.msra.mxu0 0.0
        %392 = vmatprep.subr.mxu0 0.0
        %393 = vmatpush2.msra.mxu0 0.0
        %394 = vmatprep.subr.mxu0 0.0
        %395 = vmatpush2.msra.mxu0 0.0
        %396 = vmatprep.mubr.f32.mxu0 0.0
        %397 = vmatmul.mubr.f32.gmra.mxu0 %v225
        %v398 = vpop.f32.mrf.mxu0
        %v399 = vadd.f32 %v329, %v398
        %v400 = vpop.f32.mrf.mxu0
        %401 = vdwg.mxu0
        %s402 = sadd.s32 %s223, 2
        %s403 = scalar_lea.vmem %s214, %s402
        %v404 = vld [vmem:[%s403] sm:$0xf]
        %v405 = vld [vmem:[%s222] sm:$0xff]
        %v406 = vld [vmem:[%s222 + $0x8] sm:$0xff]
        %v407 = vld [vmem:[%s222 + $0x10] sm:$0xff]
        %v408 = vld [vmem:[%s222 + $0x18] sm:$0xff]
        %vm409 = vcmask 261120
        %v411 = vsel %vm409, %v404, 0
        %413 = vmatprep.subr.mxu0 0.0
        %414 = vmatpush1.msra.mxu0 0.0
        %415 = vmatprep.subr.mxu0 0.0
        %416 = vmatpush1.msra.mxu0 0.0
        %417 = vmatprep.subr.mxu0 0.0
        %418 = vmatpush1.msra.mxu0 0.0
        %419 = vmatprep.subr.mxu0 0.0
        %420 = vmatpush1.msra.mxu0 0.0
        %421 = vmatprep.subr.mxu0 0.0
        %422 = vmatpush1.msra.mxu0 0.0
        %423 = vmatprep.subr.mxu0 0.0
        %424 = vmatpush1.msra.mxu0 0.0
        %425 = vmatprep.subr.mxu0 0.0
        %426 = vmatpush1.msra.mxu0 0.0
        %427 = vmatprep.subr.mxu0 0.0
        %428 = vmatpush1.msra.mxu0 0.0
        %429 = vmatprep.subr.mxu0 0.0
        %430 = vmatpush1.msra.mxu0 0.0
        %431 = vmatprep.subr.mxu0 0.0
        %432 = vmatpush1.msra.mxu0 0.0
        %433 = vmatprep.subr.mxu0 0.0
        %434 = vmatpush1.msra.mxu0 0.0
        %435 = vmatprep.subr.mxu0 0.0
        %436 = vmatpush1.msra.mxu0 0.0
        %437 = vmatprep.subr.mxu0 0.0
        %438 = vmatpush1.msra.mxu0 %v408
        %439 = vmatprep.subr.mxu0 0.0
        %440 = vmatpush1.msra.mxu0 %v407
        %441 = vmatprep.subr.mxu0 0.0
        %442 = vmatpush1.msra.mxu0 %v406
        %443 = vmatprep.subr.mxu0 0.0
        %444 = vmatpush1.msra.mxu0 %v405
        %445 = vmatprep.subr.mxu0 0.0
        %446 = vmatpush2.msra.mxu0 0.0
        %447 = vmatprep.subr.mxu0 0.0
        %448 = vmatpush2.msra.mxu0 0.0
        %449 = vmatprep.subr.mxu0 0.0
        %450 = vmatpush2.msra.mxu0 0.0
        %451 = vmatprep.subr.mxu0 0.0
        %452 = vmatpush2.msra.mxu0 0.0
        %453 = vmatprep.subr.mxu0 0.0
        %454 = vmatpush2.msra.mxu0 0.0
        %455 = vmatprep.subr.mxu0 0.0
        %456 = vmatpush2.msra.mxu0 0.0
        %457 = vmatprep.subr.mxu0 0.0
        %458 = vmatpush2.msra.mxu0 0.0
        %459 = vmatprep.subr.mxu0 0.0
        %460 = vmatpush2.msra.mxu0 0.0
        %461 = vmatprep.subr.mxu0 0.0
        %462 = vmatpush2.msra.mxu0 0.0
        %463 = vmatprep.subr.mxu0 0.0
        %464 = vmatpush2.msra.mxu0 0.0
        %465 = vmatprep.subr.mxu0 0.0
        %466 = vmatpush2.msra.mxu0 0.0
        %467 = vmatprep.subr.mxu0 0.0
        %468 = vmatpush2.msra.mxu0 0.0
        %469 = vmatprep.subr.mxu0 0.0
        %470 = vmatpush2.msra.mxu0 0.0
        %471 = vmatprep.subr.mxu0 0.0
        %472 = vmatpush2.msra.mxu0 0.0
        %473 = vmatprep.subr.mxu0 0.0
        %474 = vmatpush2.msra.mxu0 0.0
        %475 = vmatprep.subr.mxu0 0.0
        %476 = vmatpush2.msra.mxu0 0.0
        %477 = vmatprep.mubr.f32.mxu0 0.0
        %478 = vmatmul.mubr.f32.gmra.mxu0 %v411
        %v479 = vpop.f32.mrf.mxu0
        %v480 = vadd.f32 0.0, %v479
        %v481 = vpop.f32.mrf.mxu0
        %482 = vdwg.mxu0
        %v483 = vadd.f32 %v399, %v480
        %vm484 = vcmask 519168
        %485 = vst.msk [vmem:[%s210] sm:$0xf] %vm484, %v483
        %s486 = sand.u32 %s126, 1
        %s487 = scalar_lea.sflag [#allocation3], %s486
        %s488 = sand.u32 %s126, 1
        %s489 = smul.addr %s488, 4
        %s490 = scalar_lea.vmem [#allocation2], %s489
        // Predicated region
        $region33: #{time_embedding_forward.3} parent=31 // pred_check
          %p491 = pneg %p136
        $region34: #{time_embedding_forward.3} parent=31 // pred_check_branch
          %493 = sbr.rel (%p491) target = $region36
        $region35: #{time_embedding_forward.3} parent=31 // pred_region
          %s495 = ssub.s32 64, 64
          %496 = vsyncadd %s487, %s495
          %s497 = sadd.s32 %s24, %s23
          %s498 = sadd.s32 %s497, %s22
          %s499 = smul.addr %s498, 64
          %s500 = scalar_lea.hbm %s3, %s499
          %s502 = sshll.u32 %s490, 4
          %s503 = int_to_ptr.vmem [resolvable:$true] %s502
          %505 = dma.vmem_to_hbm [thread:$0]  %s503, 64, %s500, %s487
        $region36: #{time_embedding_forward.3} parent=31 // pred_fallthru
          _
      $region32: #{time_embedding_forward.3} parent=5 // pred_fallthru
        _
      %p506 = scmp.le.s32.totalorder 2, %s12
      // Predicated region
      $region37: #{time_embedding_forward.3} parent=5 // pred_check
        %p507 = pneg %p506
      $region38: #{time_embedding_forward.3} parent=5 // pred_check_branch
        %509 = sbr.rel (%p507) target = $region40
      $region39: #{time_embedding_forward.3} parent=5 // pred_region
        %s510 = ssub.s32 %s12, 2
        // Predicated region
        $region41: #{time_embedding_forward.3} parent=39 // pred_check
          %p511 = pneg %p142
        $region42: #{time_embedding_forward.3} parent=39 // pred_check_branch
          %513 = sbr.rel (%p511) target = $region44
        $region43: #{time_embedding_forward.3} parent=39 // pred_region
          %s514 = sand.u32 %s127, 1
          %s515 = scalar_lea.sflag [#allocation3], %s514
          %s516 = sand.u32 %s127, 1
          %s517 = smul.addr %s516, 4
          %s518 = scalar_lea.vmem [#allocation2], %s517
          %519 = dma.done %s515, 64
        $region44: #{time_embedding_forward.3} parent=39 // pred_fallthru
          _
      $region40: #{time_embedding_forward.3} parent=5 // pred_fallthru
        _
    $region6: #{time_embedding_forward.3} parent=1 // loop_footer
      %s16 = sadd.s32 1, %s12
    $region7: #{time_embedding_forward.3} parent=1 // loop_footer_branch
      %11 = sbr.rel target = $region3
    $region8: #{time_embedding_forward.3} parent=1 // loop_exit
      _
    %520 = vsyncpa [#allocation3], 1
    %s521 = scalar_lea.sflag [#allocation3], 1
    %522 = vsyncpa %s521, 1

</llo_original>
